<compile_context>
chip_gen: v6e
topology: v6e:2x2x1
jax: 0.10.0
libtpu: 0.0.40
codegen_flags: <defaults>
</compile_context>

<pallas_src>
import functools
import math

import jax
import jax.numpy as jnp
from jax import lax
from jax.experimental import pallas as pl
from jax.experimental.pallas import tpu as pltpu


_LANE = 128
_N_CAP = 256           # pack at most ~one MXU tile worth of rows (v6e/v7x: 256 wide)
_BLOCK_BYTES = 4 << 20  # ~4 MiB per input block; 2 inputs x 2 pipeline buffers = 16 MiB


# --------------------------------------------------------------------------------------
# Kernel bodies
# --------------------------------------------------------------------------------------
def _nst_epilogue(gss, gtt, gst, same_block):
    """Fold the L2 normalisation into the grams and reduce to the NST partial sum.

    gss/gtt/gst : (N, N) f32 grams of the packed rows (N = TB * C); gst[i, j] = s_i . t_j.
    same_block  : (N, N) bool, True where rows i and j belong to the same batch element.
    """
    n = gss.shape[0]
    eps2 = jnp.float32(1e-24)  # (1e-12)^2 -> matches F.normalize's eps clamp
    row = lax.broadcasted_iota(jnp.int32, (n, n), 0)
    col = lax.broadcasted_iota(jnp.int32, (n, n), 1)
    eye = row == col

    # The squared row norms are the gram diagonals; bind the masked grams once.
    masked_ss = jnp.where(eye, gss, 0.0)
    masked_tt = jnp.where(eye, gtt, 0.0)
    d2s_col = jnp.sum(masked_ss, axis=1, keepdims=True)   # (N, 1)  ||s_i||^2
    d2s_row = jnp.sum(masked_ss, axis=0, keepdims=True)   # (1, N)
    d2t_col = jnp.sum(masked_tt, axis=1, keepdims=True)
    d2t_row = jnp.sum(masked_tt, axis=0, keepdims=True)

    inv_s_col = lax.rsqrt(jnp.maximum(d2s_col, eps2))
    inv_s_row = lax.rsqrt(jnp.maximum(d2s_row, eps2))
    inv_t_col = lax.rsqrt(jnp.maximum(d2t_col, eps2))
    inv_t_row = lax.rsqrt(jnp.maximum(d2t_row, eps2))

    gss_n = gss * inv_s_col * inv_s_row
    gtt_n = gtt * inv_t_col * inv_t_row
    gst_n = gst * inv_s_col * inv_t_row   # rows = student, cols = teacher

    # Single fused reduction over the per-batch-element diagonal blocks.
    vals = gtt_n * gtt_n + gss_n * gss_n - 2.0 * gst_n * gst_n
    return jnp.sum(jnp.where(same_block, vals, 0.0))


# contract the LAST dim of BOTH operands ("A @ B.T" without materialising a transpose)
_DN = (((1,), (1,)), ((), ()))


def _nst_kernel_single(s_ref, t_ref, bcol_ref, brow_ref, out_ref):
    """Fast path: whole D in one block, no accumulator scratch, one grid axis (batch)."""
    s = s_ref[...]   # keep native dtype (bf16 stays bf16 on the MXU)
    t = t_ref[...]
    gss = lax.dot_general(s, s, _DN, preferred_element_type=jnp.float32)
    gtt = lax.dot_general(t, t, _DN, preferred_element_type=jnp.float32)
    gst = lax.dot_general(s, t, _DN, preferred_element_type=jnp.float32)
    same_block = bcol_ref[...] == brow_ref[...]          # (N,1) == (1,N) -> (N,N)
    contrib = _nst_epilogue(gss, gtt, gst, same_block)
    out_ref[...] = jnp.broadcast_to(contrib, out_ref.shape)


def _nst_kernel_chunked(s_ref, t_ref, bcol_ref, brow_ref, out_ref,
                        acc_ss, acc_tt, acc_st):
    """Large-D path: accumulate grams over D chunks (reduction axis last in the grid)."""
    k = pl.program_id(1)

    @pl.when(k == 0)
    def _init():
        acc_ss[...] = jnp.zeros_like(acc_ss)
        acc_tt[...] = jnp.zeros_like(acc_tt)
        acc_st[...] = jnp.zeros_like(acc_st)

    s = s_ref[...]
    t = t_ref[...]
    acc_ss[...] += lax.dot_general(s, s, _DN, preferred_element_type=jnp.float32)
    acc_tt[...] += lax.dot_general(t, t, _DN, preferred_element_type=jnp.float32)
    acc_st[...] += lax.dot_general(s, t, _DN, preferred_element_type=jnp.float32)

    @pl.when(k == pl.num_programs(1) - 1)
    def _finalize():
        same_block = bcol_ref[...] == brow_ref[...]
        contrib = _nst_epilogue(acc_ss[...], acc_tt[...], acc_st[...], same_block)
        out_ref[...] = jnp.broadcast_to(contrib, out_ref.shape)


# --------------------------------------------------------------------------------------
# Tiling heuristics
# --------------------------------------------------------------------------------------
def _pick_tb_single(batch, channels, elem_bytes, budget):
    """Largest TB | batch s.t. packed rows are sublane-legal, fit budget and N_CAP."""
    cands = [tb for tb in range(1, batch + 1)
             if batch % tb == 0
             and tb * elem_bytes <= budget
             and tb * channels <= max(channels, _N_CAP)
             and ((tb * channels) % 8 == 0 or tb == batch)]
    if cands:
        return max(cands)
    # Full-batch block: a block dim equal to the full array dim is exempt from the
    # sublane-multiple rule, so this is always legal (only hit for odd channel counts).
    return batch


def _pick_tb_chunked(batch, channels):
    """Smallest TB | batch with sublane-legal packed rows (D is what blows up VMEM)."""
    for tb in range(1, batch + 1):
        if batch % tb == 0 and (tb * channels) % 8 == 0:
            return tb
    return batch


# --------------------------------------------------------------------------------------
# Public entry point (PyTorch NST.forward equivalent)
# --------------------------------------------------------------------------------------
def nst_loss(fm_s, fm_t):
    """NST distillation loss. fm_s, fm_t: (B, C, ...) feature maps with identical shape."""
    assert fm_s.shape == fm_t.shape, "student/teacher feature maps must match"
    B, C = int(fm_s.shape[0]), int(fm_s.shape[1])
    D = int(math.prod(fm_s.shape[2:]))

    # glue: PyTorch .view(B, C, -1), then packed to 2-D so TB batch elements share
    # one MXU tile of rows.
    s = fm_s.reshape(B * C, D)
    t = fm_t.reshape(B * C, D)
    itemsize = jnp.dtype(s.dtype).itemsize
    elem_bytes = C * D * itemsize   # bytes per batch element at full D

    if elem_bytes <= _BLOCK_BYTES:
        # ---- common case: whole D fits in one block -> no padding, no scratch ----
        TB = _pick_tb_single(B, C, elem_bytes, _BLOCK_BYTES)
        NB = B // TB
        ND = 1
        n_rows = TB * C
        DT = D
        kernel = _nst_kernel_single
        grid = (NB,)
        in_specs = [
            pl.BlockSpec((n_rows, D), lambda bb: (bb, 0)),
            pl.BlockSpec((n_rows, D), lambda bb: (bb, 0)),
            pl.BlockSpec((n_rows, 1), lambda bb: (0, 0)),
            pl.BlockSpec((1, n_rows), lambda bb: (0, 0)),
        ]
        out_specs = pl.BlockSpec((1, 1), lambda bb: (bb, 0))
        scratch_shapes = []
        dim_sem = ("parallel",)
        acc_bytes = 0
    else:
        # ---- large-D case: lane-aligned D chunks + persistent gram accumulators ----
        TB = _pick_tb_chunked(B, C)
        NB = B // TB
        n_rows = TB * C
        DT = max(_LANE, (_BLOCK_BYTES // (n_rows * itemsize)) // _LANE * _LANE)
        ND = int(pl.cdiv(D, DT))
        D_pad = ND * DT
        if D_pad != D:
            # Zero columns contribute exactly 0 to grams and norms (only hit for huge D).
            s = jnp.pad(s, ((0, 0), (0, D_pad - D)))
            t = jnp.pad(t, ((0, 0), (0, D_pad - D)))
        kernel = _nst_kernel_chunked
        grid = (NB, ND)
        in_specs = [
            pl.BlockSpec((n_rows, DT), lambda bb, k: (bb, k)),
            pl.BlockSpec((n_rows, DT), lambda bb, k: (bb, k)),
            pl.BlockSpec((n_rows, 1), lambda bb, k: (0, 0)),
            pl.BlockSpec((1, n_rows), lambda bb, k: (0, 0)),
        ]
        out_specs = pl.BlockSpec((1, 1), lambda bb, k: (bb, 0))
        scratch_shapes = [pltpu.VMEM((n_rows, n_rows), jnp.float32)] * 3
        dim_sem = ("parallel", "arbitrary")
        acc_bytes = 3 * n_rows * n_rows * 4

    # Batch-block id of every packed row -> lets the kernel build the same-batch mask
    # with a broadcast compare (no vector integer division on the VPU).
    blk_ids = jnp.arange(n_rows, dtype=jnp.int32) // jnp.int32(C)
    blk_col = blk_ids.reshape(n_rows, 1)
    blk_row = blk_ids.reshape(1, n_rows)

    # VMEM budget: 2 inputs x 2 pipeline buffers + gram accumulators + epilogue temps.
    block_bytes = n_rows * DT * itemsize
    epi_bytes = 8 * n_rows * n_rows * 4
    vmem_limit = int(min(max(4 * block_bytes + acc_bytes + epi_bytes + (2 << 20),
                             16 << 20),
                         48 << 20))   # stays inside v7x's 64 MiB physical VMEM per core

    cost = pl.CostEstimate(
        flops=3 * 2 * B * C * C * D,
        transcendentals=4 * B * C,
        bytes_accessed=2 * B * C * D * itemsize + NB * 4)

    partials = pl.pallas_call(
        kernel,
        out_shape=jax.ShapeDtypeStruct((NB, 1), jnp.float32),
        grid_spec=pltpu.PrefetchScalarGridSpec(
            num_scalar_prefetch=0,
            grid=grid,
            in_specs=in_specs,
            out_specs=out_specs,
            scratch_shapes=scratch_shapes),
        compiler_params=pltpu.CompilerParams(
            dimension_semantics=dim_sem,
            vmem_limit_bytes=vmem_limit),
        cost_estimate=cost,
    )(s, t, blk_col, blk_row)

    # Final cross-block reduction + mean normalisation in the wrapper so the batch grid
    # axis stays parallel (and cheap: NB scalars).
    return jnp.sum(partials) / jnp.float32(B * C * C)


# --------------------------------------------------------------------------------------
# Pure-JAX reference (mirrors the PyTorch module)
# --------------------------------------------------------------------------------------
def _nst_reference(fm_s, fm_t):
    B, C = fm_s.shape[0], fm_s.shape[1]
    s = fm_s.reshape(B, C, -1).astype(jnp.float32)
    t = fm_t.reshape(B, C, -1).astype(jnp.float32)
    eps = 1e-12
    s = s / jnp.maximum(jnp.linalg.norm(s, axis=2, keepdims=True), eps)
    t = t / jnp.maximum(jnp.linalg.norm(t, axis=2, keepdims=True), eps)

    def poly(a, b):
        return jnp.einsum('bid,bjd->bij', a, b) ** 2

    return poly(t, t).mean() + poly(s, s).mean() - 2.0 * poly(s, t).mean()


if __name__ == "__main__":
    key = jax.random.PRNGKey(0)
    k1, k2 = jax.random.split(key)
    # small NCHW feature maps
    fm_s = jax.random.normal(k1, (2, 4, 16, 16), dtype=jnp.float32)
    fm_t = jax.random.normal(k2, (2, 4, 16, 16), dtype=jnp.float32)

    loss = jax.block_until_ready(nst_loss(fm_s, fm_t))
    ref = jax.block_until_ready(_nst_reference(fm_s, fm_t))

    assert jnp.allclose(loss, ref, rtol=1e-4, atol=1e-6), (loss, ref)
    print("KERNEL_OK")
</pallas_src>

<mosaic_0001>
module attributes {stable_mosaic.version = 11 : i64} {
  func.func @_nst_kernel_single(%arg0: i32, %arg1: memref<8x256xf32, #tpu.memory_space<vmem>>, %arg2: memref<8x256xf32, #tpu.memory_space<vmem>>, %arg3: memref<8x1xi32, #tpu.memory_space<vmem>>, %arg4: memref<1x8xi32, #tpu.memory_space<vmem>>, %arg5: memref<1x1xf32, #tpu.memory_space<vmem>>) attributes {dimension_semantics = [#tpu.dimension_semantics<parallel>], iteration_bounds = array<i64: 1>, scalar_prefetch = 0 : i64, scratch_operands = 0 : i64, tpu.core_type = #tpu.core_type<tc>, window_params = [{transform_indices = @transform_0, window_bounds = array<i64: 8, 256>}, {transform_indices = @transform_1, window_bounds = array<i64: 8, 256>}, {pipeline_mode = #tpu.pipeline_mode<synchronous>, transform_indices = @transform_2, window_bounds = array<i64: 8, 1>}, {pipeline_mode = #tpu.pipeline_mode<synchronous>, transform_indices = @transform_3, window_bounds = array<i64: 1, 8>}, {transform_indices = @transform_4, window_bounds = array<i64: 1, 1>}]} {
    %c0 = arith.constant 0 : index
    %c0_0 = arith.constant 0 : index
    %0 = vector.load %arg1[%c0, %c0_0] : memref<8x256xf32, #tpu.memory_space<vmem>>, vector<8x256xf32>
    %c0_1 = arith.constant 0 : index
    %c0_2 = arith.constant 0 : index
    %1 = vector.load %arg2[%c0_1, %c0_2] : memref<8x256xf32, #tpu.memory_space<vmem>>, vector<8x256xf32>
    %cst = arith.constant dense<0.000000e+00> : vector<8x8xf32>
    %2 = tpu.matmul %0, %0, %cst {dimension_numbers = #tpu.dot_dimension_numbers<[1], [1], [0], [0], [0, 0, 1, 0], [], []>} : vector<8x256xf32>, vector<8x256xf32>, vector<8x8xf32> -> vector<8x8xf32>
    %cst_3 = arith.constant dense<0.000000e+00> : vector<8x8xf32>
    %3 = tpu.matmul %1, %1, %cst_3 {dimension_numbers = #tpu.dot_dimension_numbers<[1], [1], [0], [0], [0, 0, 1, 0], [], []>} : vector<8x256xf32>, vector<8x256xf32>, vector<8x8xf32> -> vector<8x8xf32>
    %cst_4 = arith.constant dense<0.000000e+00> : vector<8x8xf32>
    %4 = tpu.matmul %0, %1, %cst_4 {dimension_numbers = #tpu.dot_dimension_numbers<[1], [1], [0], [0], [0, 0, 1, 0], [], []>} : vector<8x256xf32>, vector<8x256xf32>, vector<8x8xf32> -> vector<8x8xf32>
    %c0_5 = arith.constant 0 : index
    %c0_6 = arith.constant 0 : index
    %5 = vector.load %arg3[%c0_5, %c0_6] : memref<8x1xi32, #tpu.memory_space<vmem>>, vector<8x1xi32>
    %c0_7 = arith.constant 0 : index
    %c0_8 = arith.constant 0 : index
    %6 = vector.load %arg4[%c0_7, %c0_8] : memref<1x8xi32, #tpu.memory_space<vmem>>, vector<1x8xi32>
    %7 = vector.broadcast %5 : vector<8x1xi32> to vector<8x8xi32>
    %8 = vector.broadcast %6 : vector<1x8xi32> to vector<8x8xi32>
    %9 = arith.cmpi eq, %7, %8 : vector<8x8xi32>
    %10 = tpu.iota {dimensions = array<i32: 0>} : vector<8x8xi32>
    %11 = tpu.iota {dimensions = array<i32: 1>} : vector<8x8xi32>
    %12 = arith.cmpi eq, %10, %11 : vector<8x8xi32>
    %cst_9 = arith.constant 0.000000e+00 : f32
    %13 = vector.broadcast %cst_9 : f32 to vector<8x8xf32>
    %14 = arith.select %12, %2, %13 : vector<8x8xi1>, vector<8x8xf32>
    %cst_10 = arith.constant 0.000000e+00 : f32
    %15 = vector.broadcast %cst_10 : f32 to vector<8x8xf32>
    %16 = arith.select %12, %3, %15 : vector<8x8xi1>, vector<8x8xf32>
    %cst_11 = arith.constant dense<0.000000e+00> : vector<8xf32>
    %17 = vector.multi_reduction <add>, %14, %cst_11 [1] : vector<8x8xf32> to vector<8xf32>
    %18 = vector.shape_cast %17 : vector<8xf32> to vector<8x1xf32>
    %cst_12 = arith.constant dense<0.000000e+00> : vector<8xf32>
    %19 = vector.multi_reduction <add>, %14, %cst_12 [0] : vector<8x8xf32> to vector<8xf32>
    %20 = vector.shape_cast %19 : vector<8xf32> to vector<1x8xf32>
    %cst_13 = arith.constant dense<0.000000e+00> : vector<8xf32>
    %21 = vector.multi_reduction <add>, %16, %cst_13 [1] : vector<8x8xf32> to vector<8xf32>
    %22 = vector.shape_cast %21 : vector<8xf32> to vector<8x1xf32>
    %cst_14 = arith.constant dense<0.000000e+00> : vector<8xf32>
    %23 = vector.multi_reduction <add>, %16, %cst_14 [0] : vector<8x8xf32> to vector<8xf32>
    %24 = vector.shape_cast %23 : vector<8xf32> to vector<1x8xf32>
    %cst_15 = arith.constant 1.000000e-24 : f32
    %25 = vector.broadcast %cst_15 : f32 to vector<8x1xf32>
    %26 = arith.maximumf %18, %25 : vector<8x1xf32>
    %27 = math.rsqrt %26 : vector<8x1xf32>
    %cst_16 = arith.constant 1.000000e-24 : f32
    %28 = vector.broadcast %cst_16 : f32 to vector<1x8xf32>
    %29 = arith.maximumf %20, %28 : vector<1x8xf32>
    %30 = math.rsqrt %29 : vector<1x8xf32>
    %cst_17 = arith.constant 1.000000e-24 : f32
    %31 = vector.broadcast %cst_17 : f32 to vector<8x1xf32>
    %32 = arith.maximumf %22, %31 : vector<8x1xf32>
    %33 = math.rsqrt %32 : vector<8x1xf32>
    %cst_18 = arith.constant 1.000000e-24 : f32
    %34 = vector.broadcast %cst_18 : f32 to vector<1x8xf32>
    %35 = arith.maximumf %24, %34 : vector<1x8xf32>
    %36 = math.rsqrt %35 : vector<1x8xf32>
    %37 = vector.broadcast %27 : vector<8x1xf32> to vector<8x8xf32>
    %38 = arith.mulf %2, %37 : vector<8x8xf32>
    %39 = vector.broadcast %30 : vector<1x8xf32> to vector<8x8xf32>
    %40 = arith.mulf %38, %39 : vector<8x8xf32>
    %41 = vector.broadcast %33 : vector<8x1xf32> to vector<8x8xf32>
    %42 = arith.mulf %3, %41 : vector<8x8xf32>
    %43 = vector.broadcast %36 : vector<1x8xf32> to vector<8x8xf32>
    %44 = arith.mulf %42, %43 : vector<8x8xf32>
    %45 = vector.broadcast %27 : vector<8x1xf32> to vector<8x8xf32>
    %46 = arith.mulf %4, %45 : vector<8x8xf32>
    %47 = vector.broadcast %36 : vector<1x8xf32> to vector<8x8xf32>
    %48 = arith.mulf %46, %47 : vector<8x8xf32>
    %49 = arith.mulf %44, %44 : vector<8x8xf32>
    %50 = arith.mulf %40, %40 : vector<8x8xf32>
    %51 = arith.addf %49, %50 : vector<8x8xf32>
    %cst_19 = arith.constant 2.000000e+00 : f32
    %52 = vector.broadcast %cst_19 : f32 to vector<8x8xf32>
    %53 = arith.mulf %52, %48 : vector<8x8xf32>
    %54 = arith.mulf %53, %48 : vector<8x8xf32>
    %55 = arith.subf %51, %54 : vector<8x8xf32>
    %cst_20 = arith.constant 0.000000e+00 : f32
    %56 = vector.broadcast %cst_20 : f32 to vector<8x8xf32>
    %57 = arith.select %9, %55, %56 : vector<8x8xi1>, vector<8x8xf32>
    %58 = vector.shape_cast %57 : vector<8x8xf32> to vector<1x8x8xf32>
    %cst_21 = arith.constant dense<0.000000e+00> : vector<1xf32>
    %59 = vector.multi_reduction <add>, %58, %cst_21 [1, 2] : vector<1x8x8xf32> to vector<1xf32>
    %60 = vector.shape_cast %59 : vector<1xf32> to vector<1x1x1xf32>
    %61 = vector.extract %60[0, 0, 0] : f32 from vector<1x1x1xf32>
    %62 = vector.broadcast %61 : f32 to vector<1x1xf32>
    %c0_22 = arith.constant 0 : index
    %c0_23 = arith.constant 0 : index
    %63 = vector.load %arg5[%c0_22, %c0_23] : memref<1x1xf32, #tpu.memory_space<vmem>>, vector<1x1xf32>
    tpu.vector_store %arg5[%c0_22, %c0_23], %62 {strides = array<i32>} : memref<1x1xf32, #tpu.memory_space<vmem>>, vector<1x1xf32>,
    return
  }
  func.func @transform_0(%arg0: i32) -> (i32, i32) {
    %c0_i32 = arith.constant 0 : i32
    %c0_i32_0 = arith.constant 0 : i32
    return %arg0, %c0_i32 : i32, i32
  }
  func.func @transform_1(%arg0: i32) -> (i32, i32) {
    %c0_i32 = arith.constant 0 : i32
    %c0_i32_0 = arith.constant 0 : i32
    return %arg0, %c0_i32 : i32, i32
  }
  func.func @transform_2(%arg0: i32) -> (i32, i32) {
    %c0_i32 = arith.constant 0 : i32
    %c0_i32_0 = arith.constant 0 : i32
    %c0_i32_1 = arith.constant 0 : i32
    return %c0_i32, %c0_i32_0 : i32, i32
  }
  func.func @transform_3(%arg0: i32) -> (i32, i32) {
    %c0_i32 = arith.constant 0 : i32
    %c0_i32_0 = arith.constant 0 : i32
    %c0_i32_1 = arith.constant 0 : i32
    return %c0_i32, %c0_i32_0 : i32, i32
  }
  func.func @transform_4(%arg0: i32) -> (i32, i32) {
    %c0_i32 = arith.constant 0 : i32
    %c0_i32_0 = arith.constant 0 : i32
    return %arg0, %c0_i32 : i32, i32
  }
}

</mosaic_0001>

<llo_original>
// kernel: tpu_custom_call.1
$region0: #{tpu_custom_call.1}
  #allocation0 [shape = 'u32[]', space=smem, size = 0x4, offset = 0x4, fixed_abs, tag = 'smem constant byte address 0x4 - core index']
  #allocation1 [shape = 'u32[144,128]{1,0:T(1,128)}', space=vmem, size = 0x12000, scoped, tag = 'internal scratch']
  %s0 = inlined_call_operand.hbm [shape: f32[8,256], index: 0, kind: input, shape index: {}]
  %s1 = inlined_call_operand.hbm [shape: f32[8,256], index: 1, kind: input, shape index: {}]
  %s2 = inlined_call_operand.vmem [shape: s32[8,1], index: 2, kind: input, shape index: {}]
  %s3 = inlined_call_operand.vmem [shape: s32[1,8], index: 3, kind: input, shape index: {}]
  %s4 = inlined_call_operand.hbm [shape: f32[1,1], index: 4, kind: output, shape index: {}]
  %s5 = sld [smem:[#allocation0]]
  $region34: #{tpu_custom_call.1} parent=0
    _
  %s7 = ssub.s32 1, %s5
  %s8 = scalar_select 0, %s7, %s5
  $region1: #{tpu_custom_call.1} parent=0
    #allocation2 [shape = 'u8[8192]{0}', space=vmem, size = 0x2000, scoped, tag = 'input window, operand 0, single buffered']
    #allocation3 [shape = 's32[1]{0}', space=sflag, size = 0x4, scoped, tag = 'scoped memory for tpu_custom_call.1']
    #allocation4 [shape = 's32[1]{0}', space=sflag, size = 0x4, scoped, tag = 'scoped memory for tpu_custom_call.1']
    #allocation5 [shape = 'u8[8192]{0}', space=vmem, size = 0x2000, scoped, tag = 'input window, operand 1, single buffered']
    #allocation6 [shape = 's32[1]{0}', space=sflag, size = 0x4, scoped, tag = 'scoped memory for tpu_custom_call.1']
    #allocation7 [shape = 'u8[512]{0}', space=vmem, size = 0x400, scoped, tag = 'output window, operand 0, single buffered']
    %9 = vsyncpa [#allocation3], 0
    %10 = vsyncpa [#allocation6], 0
    %11 = vsyncpa [#allocation4], 0
    // Predicated region
    $region2: #{tpu_custom_call.1} parent=1 // pred_check
      _
    $region3: #{tpu_custom_call.1} parent=1 // pred_check_branch
      %13 = sbr.rel (0) target = $region5
    $region4: #{tpu_custom_call.1} parent=1 // pred_region
      %s15 = ssub.s32 256, 256
      %16 = vsyncadd [#allocation3], %s15
      %s18 = sshll.u32 [#allocation2], 4
      %s19 = int_to_ptr.vmem [resolvable:$true] %s18
      %21 = dma.hbm_to_vmem [thread:$0]  %s0, 256, %s19, [#allocation3]
    $region5: #{tpu_custom_call.1} parent=1 // pred_fallthru
      _
    // Predicated region
    $region6: #{tpu_custom_call.1} parent=1 // pred_check
      _
    $region7: #{tpu_custom_call.1} parent=1 // pred_check_branch
      %23 = sbr.rel (0) target = $region9
    $region8: #{tpu_custom_call.1} parent=1 // pred_region
      %s25 = ssub.s32 256, 256
      %26 = vsyncadd [#allocation6], %s25
      %s28 = sshll.u32 [#allocation5], 4
      %s29 = int_to_ptr.vmem [resolvable:$true] %s28
      %31 = dma.hbm_to_vmem [thread:$0]  %s1, 256, %s29, [#allocation6]
    $region9: #{tpu_custom_call.1} parent=1 // pred_fallthru
      _
    // Predicated region
    $region10: #{tpu_custom_call.1} parent=1 // pred_check
      _
    $region11: #{tpu_custom_call.1} parent=1 // pred_check_branch
      %33 = sbr.rel (0) target = $region13
    $region12: #{tpu_custom_call.1} parent=1 // pred_region
      _
    $region13: #{tpu_custom_call.1} parent=1 // pred_fallthru
      _
    // Predicated region
    $region14: #{tpu_custom_call.1} parent=1 // pred_check
      _
    $region15: #{tpu_custom_call.1} parent=1 // pred_check_branch
      %35 = sbr.rel (0) target = $region17
    $region16: #{tpu_custom_call.1} parent=1 // pred_region
      _
    $region17: #{tpu_custom_call.1} parent=1 // pred_fallthru
      _
    // Predicated region
    $region18: #{tpu_custom_call.1} parent=1 // pred_check
      _
    $region19: #{tpu_custom_call.1} parent=1 // pred_check_branch
      %37 = sbr.rel (0) target = $region21
    $region20: #{tpu_custom_call.1} parent=1 // pred_region
      %38 = dma.done [#allocation3], 256
    $region21: #{tpu_custom_call.1} parent=1 // pred_fallthru
      _
    // Predicated region
    $region22: #{tpu_custom_call.1} parent=1 // pred_check
      _
    $region23: #{tpu_custom_call.1} parent=1 // pred_check_branch
      %40 = sbr.rel (0) target = $region25
    $region24: #{tpu_custom_call.1} parent=1 // pred_region
      %41 = dma.done [#allocation6], 256
    $region25: #{tpu_custom_call.1} parent=1 // pred_fallthru
      _
    %v42 = vld [vmem:[#allocation2] sm:$0xff]
    %v43 = vld [vmem:[#allocation2 + $0x8] sm:$0xff]
    %v44 = vld [vmem:[#allocation5] sm:$0xff]
    %v45 = vld [vmem:[#allocation5 + $0x8] sm:$0xff]
    %46 = vmatprep.subr.mxu0 0.0
    %47 = vmatpush1.xpose.msra.mxu0 0.0
    %48 = vmatprep.subr.mxu0 0.0
    %49 = vmatpush1.xpose.msra.mxu0 0.0
    %50 = vmatprep.subr.mxu0 0.0
    %51 = vmatpush1.xpose.msra.mxu0 0.0
    %52 = vmatprep.subr.mxu0 0.0
    %53 = vmatpush1.xpose.msra.mxu0 0.0
    %54 = vmatprep.subr.mxu0 0.0
    %55 = vmatpush1.xpose.msra.mxu0 0.0
    %56 = vmatprep.subr.mxu0 0.0
    %57 = vmatpush1.xpose.msra.mxu0 0.0
    %58 = vmatprep.subr.mxu0 0.0
    %59 = vmatpush1.xpose.msra.mxu0 0.0
    %60 = vmatprep.subr.mxu0 0.0
    %61 = vmatpush1.xpose.msra.mxu0 0.0
    %62 = vmatprep.subr.mxu0 0.0
    %63 = vmatpush1.xpose.msra.mxu0 0.0
    %64 = vmatprep.subr.mxu0 0.0
    %65 = vmatpush1.xpose.msra.mxu0 0.0
    %66 = vmatprep.subr.mxu0 0.0
    %67 = vmatpush1.xpose.msra.mxu0 0.0
    %68 = vmatprep.subr.mxu0 0.0
    %69 = vmatpush1.xpose.msra.mxu0 0.0
    %70 = vmatprep.subr.mxu0 0.0
    %71 = vmatpush1.xpose.msra.mxu0 0.0
    %72 = vmatprep.subr.mxu0 0.0
    %73 = vmatpush1.xpose.msra.mxu0 0.0
    %74 = vmatprep.subr.mxu0 0.0
    %75 = vmatpush1.xpose.msra.mxu0 0.0
    %76 = vmatprep.subr.mxu0 %v43
    %77 = vmatpush1.xpose.msra.mxu0 %v42
    %78 = vmatprep.subr.mxu0 0.0
    %79 = vmatpush2.xpose.msra.mxu0 0.0
    %80 = vmatprep.subr.mxu0 0.0
    %81 = vmatpush2.xpose.msra.mxu0 0.0
    %82 = vmatprep.subr.mxu0 0.0
    %83 = vmatpush2.xpose.msra.mxu0 0.0
    %84 = vmatprep.subr.mxu0 0.0
    %85 = vmatpush2.xpose.msra.mxu0 0.0
    %86 = vmatprep.subr.mxu0 0.0
    %87 = vmatpush2.xpose.msra.mxu0 0.0
    %88 = vmatprep.subr.mxu0 0.0
    %89 = vmatpush2.xpose.msra.mxu0 0.0
    %90 = vmatprep.subr.mxu0 0.0
    %91 = vmatpush2.xpose.msra.mxu0 0.0
    %92 = vmatprep.subr.mxu0 0.0
    %93 = vmatpush2.xpose.msra.mxu0 0.0
    %94 = vmatprep.subr.mxu0 0.0
    %95 = vmatpush2.xpose.msra.mxu0 0.0
    %96 = vmatprep.subr.mxu0 0.0
    %97 = vmatpush2.xpose.msra.mxu0 0.0
    %98 = vmatprep.subr.mxu0 0.0
    %99 = vmatpush2.xpose.msra.mxu0 0.0
    %100 = vmatprep.subr.mxu0 0.0
    %101 = vmatpush2.xpose.msra.mxu0 0.0
    %102 = vmatprep.subr.mxu0 0.0
    %103 = vmatpush2.xpose.msra.mxu0 0.0
    %104 = vmatprep.subr.mxu0 0.0
    %105 = vmatpush2.xpose.msra.mxu0 0.0
    %106 = vmatprep.subr.mxu0 0.0
    %107 = vmatpush2.xpose.msra.mxu0 0.0
    %108 = vmatprep.subr.mxu0 0.0
    %109 = vmatpush2.xpose.msra.mxu0 0.0
    %110 = vmatprep.mubr.f32.mxu0 %v43
    %111 = vmatmul.mubr.f32.gmra.mxu0 %v42
    %v112 = vpop.f32.mrf.mxu0
    %v113 = vadd.f32 0.0, %v112
    %v114 = vpop.f32.mrf.mxu0
    %115 = vdwg.mxu0
    %116 = vmatprep.subr.mxu0 0.0
    %117 = vmatpush1.xpose.msra.mxu0 0.0
    %118 = vmatprep.subr.mxu0 0.0
    %119 = vmatpush1.xpose.msra.mxu0 0.0
    %120 = vmatprep.subr.mxu0 0.0
    %121 = vmatpush1.xpose.msra.mxu0 0.0
    %122 = vmatprep.subr.mxu0 0.0
    %123 = vmatpush1.xpose.msra.mxu0 0.0
    %124 = vmatprep.subr.mxu0 0.0
    %125 = vmatpush1.xpose.msra.mxu0 0.0
    %126 = vmatprep.subr.mxu0 0.0
    %127 = vmatpush1.xpose.msra.mxu0 0.0
    %128 = vmatprep.subr.mxu0 0.0
    %129 = vmatpush1.xpose.msra.mxu0 0.0
    %130 = vmatprep.subr.mxu0 0.0
    %131 = vmatpush1.xpose.msra.mxu0 0.0
    %132 = vmatprep.subr.mxu0 0.0
    %133 = vmatpush1.xpose.msra.mxu0 0.0
    %134 = vmatprep.subr.mxu0 0.0
    %135 = vmatpush1.xpose.msra.mxu0 0.0
    %136 = vmatprep.subr.mxu0 0.0
    %137 = vmatpush1.xpose.msra.mxu0 0.0
    %138 = vmatprep.subr.mxu0 0.0
    %139 = vmatpush1.xpose.msra.mxu0 0.0
    %140 = vmatprep.subr.mxu0 0.0
    %141 = vmatpush1.xpose.msra.mxu0 0.0
    %142 = vmatprep.subr.mxu0 0.0
    %143 = vmatpush1.xpose.msra.mxu0 0.0
    %144 = vmatprep.subr.mxu0 0.0
    %145 = vmatpush1.xpose.msra.mxu0 0.0
    %146 = vmatprep.subr.mxu0 %v45
    %147 = vmatpush1.xpose.msra.mxu0 %v44
    %148 = vmatprep.subr.mxu0 0.0
    %149 = vmatpush2.xpose.msra.mxu0 0.0
    %150 = vmatprep.subr.mxu0 0.0
    %151 = vmatpush2.xpose.msra.mxu0 0.0
    %152 = vmatprep.subr.mxu0 0.0
    %153 = vmatpush2.xpose.msra.mxu0 0.0
    %154 = vmatprep.subr.mxu0 0.0
    %155 = vmatpush2.xpose.msra.mxu0 0.0
    %156 = vmatprep.subr.mxu0 0.0
    %157 = vmatpush2.xpose.msra.mxu0 0.0
    %158 = vmatprep.subr.mxu0 0.0
    %159 = vmatpush2.xpose.msra.mxu0 0.0
    %160 = vmatprep.subr.mxu0 0.0
    %161 = vmatpush2.xpose.msra.mxu0 0.0
    %162 = vmatprep.subr.mxu0 0.0
    %163 = vmatpush2.xpose.msra.mxu0 0.0
    %164 = vmatprep.subr.mxu0 0.0
    %165 = vmatpush2.xpose.msra.mxu0 0.0
    %166 = vmatprep.subr.mxu0 0.0
    %167 = vmatpush2.xpose.msra.mxu0 0.0
    %168 = vmatprep.subr.mxu0 0.0
    %169 = vmatpush2.xpose.msra.mxu0 0.0
    %170 = vmatprep.subr.mxu0 0.0
    %171 = vmatpush2.xpose.msra.mxu0 0.0
    %172 = vmatprep.subr.mxu0 0.0
    %173 = vmatpush2.xpose.msra.mxu0 0.0
    %174 = vmatprep.subr.mxu0 0.0
    %175 = vmatpush2.xpose.msra.mxu0 0.0
    %176 = vmatprep.subr.mxu0 0.0
    %177 = vmatpush2.xpose.msra.mxu0 0.0
    %178 = vmatprep.subr.mxu0 0.0
    %179 = vmatpush2.xpose.msra.mxu0 0.0
    %180 = vmatprep.mubr.f32.mxu0 %v45
    %181 = vmatmul.mubr.f32.gmra.mxu0 %v44
    %v182 = vpop.f32.mrf.mxu0
    %v183 = vadd.f32 0.0, %v182
    %v184 = vpop.f32.mrf.mxu0
    %185 = vdwg.mxu0
    %186 = vmatprep.subr.mxu0 0.0
    %187 = vmatpush1.xpose.msra.mxu0 0.0
    %188 = vmatprep.subr.mxu0 0.0
    %189 = vmatpush1.xpose.msra.mxu0 0.0
    %190 = vmatprep.subr.mxu0 0.0
    %191 = vmatpush1.xpose.msra.mxu0 0.0
    %192 = vmatprep.subr.mxu0 0.0
    %193 = vmatpush1.xpose.msra.mxu0 0.0
    %194 = vmatprep.subr.mxu0 0.0
    %195 = vmatpush1.xpose.msra.mxu0 0.0
    %196 = vmatprep.subr.mxu0 0.0
    %197 = vmatpush1.xpose.msra.mxu0 0.0
    %198 = vmatprep.subr.mxu0 0.0
    %199 = vmatpush1.xpose.msra.mxu0 0.0
    %200 = vmatprep.subr.mxu0 0.0
    %201 = vmatpush1.xpose.msra.mxu0 0.0
    %202 = vmatprep.subr.mxu0 0.0
    %203 = vmatpush1.xpose.msra.mxu0 0.0
    %204 = vmatprep.subr.mxu0 0.0
    %205 = vmatpush1.xpose.msra.mxu0 0.0
    %206 = vmatprep.subr.mxu0 0.0
    %207 = vmatpush1.xpose.msra.mxu0 0.0
    %208 = vmatprep.subr.mxu0 0.0
    %209 = vmatpush1.xpose.msra.mxu0 0.0
    %210 = vmatprep.subr.mxu0 0.0
    %211 = vmatpush1.xpose.msra.mxu0 0.0
    %212 = vmatprep.subr.mxu0 0.0
    %213 = vmatpush1.xpose.msra.mxu0 0.0
    %214 = vmatprep.subr.mxu0 0.0
    %215 = vmatpush1.xpose.msra.mxu0 0.0
    %216 = vmatprep.subr.mxu0 %v45
    %217 = vmatpush1.xpose.msra.mxu0 %v44
    %218 = vmatprep.subr.mxu0 0.0
    %219 = vmatpush2.xpose.msra.mxu0 0.0
    %220 = vmatprep.subr.mxu0 0.0
    %221 = vmatpush2.xpose.msra.mxu0 0.0
    %222 = vmatprep.subr.mxu0 0.0
    %223 = vmatpush2.xpose.msra.mxu0 0.0
    %224 = vmatprep.subr.mxu0 0.0
    %225 = vmatpush2.xpose.msra.mxu0 0.0
    %226 = vmatprep.subr.mxu0 0.0
    %227 = vmatpush2.xpose.msra.mxu0 0.0
    %228 = vmatprep.subr.mxu0 0.0
    %229 = vmatpush2.xpose.msra.mxu0 0.0
    %230 = vmatprep.subr.mxu0 0.0
    %231 = vmatpush2.xpose.msra.mxu0 0.0
    %232 = vmatprep.subr.mxu0 0.0
    %233 = vmatpush2.xpose.msra.mxu0 0.0
    %234 = vmatprep.subr.mxu0 0.0
    %235 = vmatpush2.xpose.msra.mxu0 0.0
    %236 = vmatprep.subr.mxu0 0.0
    %237 = vmatpush2.xpose.msra.mxu0 0.0
    %238 = vmatprep.subr.mxu0 0.0
    %239 = vmatpush2.xpose.msra.mxu0 0.0
    %240 = vmatprep.subr.mxu0 0.0
    %241 = vmatpush2.xpose.msra.mxu0 0.0
    %242 = vmatprep.subr.mxu0 0.0
    %243 = vmatpush2.xpose.msra.mxu0 0.0
    %244 = vmatprep.subr.mxu0 0.0
    %245 = vmatpush2.xpose.msra.mxu0 0.0
    %246 = vmatprep.subr.mxu0 0.0
    %247 = vmatpush2.xpose.msra.mxu0 0.0
    %248 = vmatprep.subr.mxu0 0.0
    %249 = vmatpush2.xpose.msra.mxu0 0.0
    %250 = vmatprep.mubr.f32.mxu0 %v43
    %251 = vmatmul.mubr.f32.gmra.mxu0 %v42
    %v252 = vpop.f32.mrf.mxu0
    %v253 = vadd.f32 0.0, %v252
    %v254 = vpop.f32.mrf.mxu0
    %255 = vdwg.mxu0
    %v256 = vld [vmem:[%s2] sm:$0xff]
    %v257 = vld [vmem:[%s3] sm:$0x1]
    %258 = vset.pattern.permute.xlu0 0
    %259 = vperm.xlu0 %258, %v256
    %v260 = vpop.permute.xlu0 %259
    %v261 = vlaneseq
    %v262 = vshrl.u32 %v261, 7
    %v263 = vsub.s32 0, %v262
    %v264 = vrot.slane %v257, %v263
    %vm265 = vcmp.eq.s32.totalorder %v260, %v264
    %v266 = vlaneseq
    %v267 = vshrl.u32 %v266, 7
    %v268 = vlaneseq
    %v269 = vand.u32 %v268, 127
    %vm270 = vcmp.eq.s32.totalorder %v267, %v269
    %v271 = vsel %vm270, %v113, 0.0
    %v272 = vsel %vm270, %v183, 0.0
    %vm273 = vcmask 64512
    %v274 = vsel %vm273, %v271, 0.0
    %275 = vadd.xlane.f32.xlu0 %v274
    %v276 = vpop.xlane.xlu0 %275
    %v277 = vrot.slane %v274, 4
    %v278 = vadd.f32 %v274, %v277
    %v279 = vrot.slane %v278, 2
    %v280 = vadd.f32 %v278, %v279
    %v281 = vrot.slane %v280, 1
    %v282 = vadd.f32 %v280, %v281
    %v283 = vsel %vm273, %v272, 0.0
    %284 = vadd.xlane.f32.xlu0 %v283
    %v285 = vpop.xlane.xlu0 %284
    %v286 = vrot.slane %v283, 4
    %v287 = vadd.f32 %v283, %v286
    %v288 = vrot.slane %v287, 2
    %v289 = vadd.f32 %v287, %v288
    %v290 = vrot.slane %v289, 1
    %v291 = vadd.f32 %v289, %v290
    %v292 = vmax.f32 %v276, 1e-24
    %v293 = vrsqrt.pop %v292
    %v294 = vmax.f32 %v282, 1e-24
    %v295 = vrsqrt.pop %v294
    %v296 = vmax.f32 %v285, 1e-24
    %v297 = vrsqrt.pop %v296
    %v298 = vmax.f32 %v291, 1e-24
    %v299 = vrsqrt.pop %v298
    %v300 = vmul.f32 %v113, %v293
    %v301 = vmul.f32 %v300, %v295
    %v302 = vmul.f32 %v183, %v297
    %v303 = vmul.f32 %v302, %v299
    %v304 = vmul.f32 %v253, %v293
    %v305 = vmul.f32 %v304, %v299
    %v306 = vmul.f32 %v303, %v303
    %v307 = vmul.f32 %v301, %v301
    %v308 = vadd.f32 %v306, %v307
    %v309 = vmul.f32 %v305, 2.0
    %v310 = vmul.f32 %v309, %v305
    %v311 = vsub.f32 %v308, %v310
    %v312 = vsel %vm265, %v311, 0.0
    %v313 = vsel %vm273, %v312, 0.0
    %314 = vadd.xlane.f32.xlu0 %v313
    %v315 = vpop.xlane.xlu0 %314
    %v316 = vrot.slane %v315, 4
    %v317 = vadd.f32 %v315, %v316
    %v318 = vrot.slane %v317, 2
    %v319 = vadd.f32 %v317, %v318
    %v320 = vrot.slane %v319, 1
    %v321 = vadd.f32 %v319, %v320
    %s322 = vtos %v321
    %v323 = vstv %s322
    %vm324 = vcmask 0
    %325 = vst.msk [vmem:[#allocation7] sm:$0x1] %vm324, %v323
    // Predicated region
    $region26: #{tpu_custom_call.1} parent=1 // pred_check
      _
    $region27: #{tpu_custom_call.1} parent=1 // pred_check_branch
      %327 = sbr.rel (0) target = $region29
    $region28: #{tpu_custom_call.1} parent=1 // pred_region
      %s329 = ssub.s32 16, 16
      %330 = vsyncadd [#allocation4], %s329
      %s332 = sshll.u32 [#allocation7], 4
      %s333 = int_to_ptr.vmem [resolvable:$true] %s332
      %335 = dma.vmem_to_hbm [thread:$0]  %s333, 16, %s4, [#allocation4]
    $region29: #{tpu_custom_call.1} parent=1 // pred_fallthru
      _
    // Predicated region
    $region30: #{tpu_custom_call.1} parent=1 // pred_check
      _
    $region31: #{tpu_custom_call.1} parent=1 // pred_check_branch
      %337 = sbr.rel (0) target = $region33
    $region32: #{tpu_custom_call.1} parent=1 // pred_region
      %338 = dma.done [#allocation4], 16
    $region33: #{tpu_custom_call.1} parent=1 // pred_fallthru
      _
    %339 = vsyncpa [#allocation3], 1
    %340 = vsyncpa [#allocation6], 1
    %341 = vsyncpa [#allocation4], 1

</llo_original>
